<compile_context>
chip_gen: v7x
topology: tpu7x:2x2x1
jax: 0.10.0
libtpu: 0.0.40
codegen_flags: <defaults>
</compile_context>

<pallas_src>
import functools

import jax
import jax.numpy as jnp
from jax.experimental import pallas as pl
from jax.experimental.pallas import tpu as pltpu


def _choose_block_b(B, S, H, hid_itemsize, budget_bytes=40 * 1024 * 1024):
    """Pick the batch tile TB.

    Largest multiple of 8 such that the double-buffered hidden+mask tiles,
    the in-kernel f32 working copy and the double-buffered output tiles fit
    `budget_bytes` (safe on v5e/v6e 128 MiB and v7x 64 MiB VMEM), capped at
    256, and kept small enough to leave >= 4 grid steps so v7x's two
    TensorCores both get work.  Tiny batches (B <= 8) use the full extent
    (a legal BlockSpec leading dim)."""
    if B <= 8:
        return B
    per_row = (2 * (S * H + S) * hid_itemsize   # double-buffered input tiles
               + S * H * 4                      # f32 working copy of hidden
               + 2 * (H + S) * 4)               # double-buffered output tiles
    cap = int(budget_bytes // max(per_row, 1))
    cap = max(8, min(256, (cap // 8) * 8))
    # Aim for >= 4 grid steps when the batch allows it (v7x megacore).
    target = max(8, (pl.cdiv(B, 4) // 8) * 8)
    return min(cap, target)


def _vmem_limit_bytes(TB, S, H, hid_itemsize):
    """Scoped-VMEM limit derived from the actual tile footprint plus ~50%
    headroom for Mosaic temporaries, clamped to stay inside v7x's 64 MiB
    physical VMEM and never below the 32 MiB scoped default."""
    tiles = (2 * (TB * S * H + TB * S) * hid_itemsize   # double-buffered inputs
             + 2 * (TB * H + TB * S) * 4                # double-buffered outputs
             + H * 4)                                   # resident W@q
    temps = TB * S * H * 4 + 6 * TB * S * 4 + TB * H * 4
    limit = int(1.5 * (tiles + temps)) + (2 << 20)
    return max(32 << 20, min(limit, 56 << 20))


def _attention_kernel(hidden_ref, mask_ref, wq_ref, pooled_ref, scores_ref,
                      *, batch, block_b):
    # Upcast right after load so callers may stream bf16 hidden (halves HBM
    # bytes on this mem-bound path); f32 input -> no-op.
    hidden = hidden_ref[...].astype(jnp.float32)      # [TB, S, H]
    mask = mask_ref[...].astype(jnp.float32)          # [TB, S]
    wq = wq_ref[...]                                  # [1, H]  == W @ q

    if batch % block_b != 0:
        # Partial last tile: rows past `batch` hold unspecified data (their
        # outputs are dropped on writeback); sanitize so they cannot produce
        # Inf/NaN.  Traced only when B % TB != 0 — zero cost otherwise.
        row0 = pl.program_id(0) * block_b
        rows = jax.lax.broadcasted_iota(jnp.int32, (block_b, 1), 0) + row0
        in_bounds = rows < batch
        hidden = jnp.where(in_bounds[:, :, None], hidden, 0.0)
        mask = jnp.where(in_bounds, mask, 1.0)

    valid = mask > 0.0                                # reused for both selects

    # logits[b,s] = hidden[b,s,:] . (W @ q)
    # (the constant bias.q term is dropped: softmax is shift-invariant per
    #  row, and masked entries are overwritten with -1e32 anyway)
    logits = jnp.sum(hidden * wq[0][None, None, :], axis=-1)    # [TB, S]

    # Masked softmax over the sequence axis.
    masked = jnp.where(valid, logits, jnp.float32(-1e32))       # [TB, S]
    m = jnp.max(masked, axis=1, keepdims=True)                  # [TB, 1]
    e = jnp.exp(masked - m)                                     # [TB, S]
    denom = jnp.sum(e, axis=1, keepdims=True)                   # [TB, 1]
    scores = e * pl.reciprocal(denom, approx=False)             # [TB, S]
    ms = jnp.where(valid, scores, jnp.float32(0.0))             # [TB, S]

    # pooled_pre[b,:] = sum_s ms[b,s] * hidden[b,s,:].  The `@ W + bias`
    # finish is hoisted to the wrapper (one batch-wide MXU matmul; W and bias
    # never enter kernel VMEM).
    pooled_ref[...] = jnp.sum(ms[:, :, None] * hidden, axis=1)  # [TB, H]
    scores_ref[...] = scores


def attention_forward(batch_hidden, batch_masks, weight, bias, query,
                      *, block_b=None):
    """batch_hidden: [B,S,H] (f32 or bf16), batch_masks: [B,S] (0/1).

    Returns (batch_outputs [B,H] f32, attn_scores [B,S] f32)."""
    B, S, H = batch_hidden.shape
    f32 = jnp.float32
    hid_itemsize = jnp.dtype(batch_hidden.dtype).itemsize

    TB = _choose_block_b(B, S, H, hid_itemsize) if block_b is None else block_b
    assert TB == B or TB % 8 == 0, "block_b must be a multiple of 8 (or == B)"
    num_blocks = pl.cdiv(B, TB)

    weight_f = weight.astype(f32)
    bias_f = bias.astype(f32)
    mask_f = batch_masks.astype(f32)
    # W @ q precomputed once outside the grid (tiny).
    wq = jnp.dot(weight_f, query.astype(f32),
                 precision=jax.lax.Precision.HIGHEST).reshape(1, H)

    grid_spec = pltpu.PrefetchScalarGridSpec(
        num_scalar_prefetch=0,
        grid=(num_blocks,),
        in_specs=[
            # `hidden` streamed straight from HBM — no padded HBM copy; the
            # last two dims are full extents (legal BlockSpec), Mosaic
            # lane-pads in VMEM.
            pl.BlockSpec((TB, S, H), lambda i: (i, 0, 0)),
            pl.BlockSpec((TB, S), lambda i: (i, 0)),
            pl.BlockSpec((1, H), lambda i: (0, 0)),      # W@q (grid-invariant)
        ],
        out_specs=(
            pl.BlockSpec((TB, H), lambda i: (i, 0)),     # pooled_pre
            pl.BlockSpec((TB, S), lambda i: (i, 0)),     # attn scores
        ),
    )
    # TODO(synk): for very large S*H where even TB=8 overflows v7x's 64 MiB
    # VMEM, add an inner S grid axis ("arbitrary") with online-softmax
    # accumulators (m, l, pooled_pre) in VMEM scratch.

    pooled_pre, scores = pl.pallas_call(
        functools.partial(_attention_kernel, batch=B, block_b=TB),
        out_shape=(jax.ShapeDtypeStruct((B, H), f32),
                   jax.ShapeDtypeStruct((B, S), f32)),
        grid_spec=grid_spec,
        compiler_params=pltpu.CompilerParams(
            dimension_semantics=("parallel",),   # batch tiles are independent
            vmem_limit_bytes=_vmem_limit_bytes(TB, S, H, hid_itemsize),
        ),
    )(batch_hidden, mask_f, wq)

    # Finish: pooled = pooled_pre @ W + (sum_s masked_scores) * bias.
    # One batch-wide MXU matmul (full row occupancy) on [B,H]/[B,S] data —
    # negligible next to the [B,S,H] stream the kernel just consumed.
    ms_sum = jnp.sum(jnp.where(mask_f > 0, scores, 0.0), axis=1, keepdims=True)
    pooled = (jnp.dot(pooled_pre, weight_f,
                      precision=jax.lax.Precision.HIGHEST)
              + ms_sum * bias_f[None, :])
    return pooled, scores


def _reference(batch_hidden, batch_masks, weight, bias, query):
    key = jnp.einsum('bsh,hk->bsk', batch_hidden, weight) + bias
    outputs = jnp.einsum('bsh,h->bs', key, query)
    masked = jnp.where(batch_masks > 0, outputs, -1e32)
    scores = jax.nn.softmax(masked, axis=1)
    masked_scores = jnp.where(batch_masks > 0, scores, 0.0)
    pooled = jnp.einsum('bs,bsh->bh', masked_scores, key)
    return pooled, scores


if __name__ == "__main__":
    B, S, H = 2, 8, 32

    key0 = jax.random.PRNGKey(0)
    k_hidden, k_weight, k_query = jax.random.split(key0, 3)

    batch_hidden = jax.random.normal(k_hidden, (B, S, H), dtype=jnp.float32)

    # Deterministic parameter init mirroring the module's __init__:
    #   weight ~ N(0, 0.05), bias = 0, query ~ N(0, 0.05)
    weight = 0.05 * jax.random.normal(k_weight, (H, H), dtype=jnp.float32)
    bias = jnp.zeros((H,), dtype=jnp.float32)
    query = 0.05 * jax.random.normal(k_query, (H,), dtype=jnp.float32)

    # Masks: first batch fully valid, second batch has a padded tail.
    batch_masks = jnp.ones((B, S), dtype=jnp.float32)
    batch_masks = batch_masks.at[1, 5:].set(0.0)

    ref_pooled, ref_scores = _reference(batch_hidden, batch_masks,
                                        weight, bias, query)

    # Default path: TB = B (full-extent batch tile, no padding anywhere).
    pooled, scores = attention_forward(batch_hidden, batch_masks,
                                       weight, bias, query)
    jax.block_until_ready((pooled, scores))
    assert jnp.allclose(pooled, ref_pooled, atol=1e-5, rtol=1e-5)
    assert jnp.allclose(scores, ref_scores, atol=1e-5, rtol=1e-5)

    # Partial-tile path: force TB=8 > B to exercise the in-kernel row-bounds
    # guard used when the batch doesn't divide the tile.
    pooled_p, scores_p = attention_forward(batch_hidden, batch_masks,
                                           weight, bias, query, block_b=8)
    jax.block_until_ready((pooled_p, scores_p))
    assert jnp.allclose(pooled_p, ref_pooled, atol=1e-5, rtol=1e-5)
    assert jnp.allclose(scores_p, ref_scores, atol=1e-5, rtol=1e-5)

    print("KERNEL_OK")
</pallas_src>

<mosaic_0001>
module attributes {stable_mosaic.version = 11 : i64} {
  func.func @_attention_kernel(%arg0: i32, %arg1: memref<2x8x32xf32, #tpu.memory_space<vmem>>, %arg2: memref<2x8xf32, #tpu.memory_space<vmem>>, %arg3: memref<1x32xf32, #tpu.memory_space<vmem>>, %arg4: memref<2x32xf32, #tpu.memory_space<vmem>>, %arg5: memref<2x8xf32, #tpu.memory_space<vmem>>) attributes {dimension_semantics = [#tpu.dimension_semantics<parallel>], iteration_bounds = array<i64: 1>, scalar_prefetch = 0 : i64, scratch_operands = 0 : i64, tpu.core_type = #tpu.core_type<tc>, window_params = [{transform_indices = @transform_0, window_bounds = array<i64: 2, 8, 32>}, {transform_indices = @transform_1, window_bounds = array<i64: 2, 8>}, {pipeline_mode = #tpu.pipeline_mode<synchronous>, transform_indices = @transform_2, window_bounds = array<i64: 1, 32>}, {transform_indices = @transform_3, window_bounds = array<i64: 2, 32>}, {transform_indices = @transform_4, window_bounds = array<i64: 2, 8>}]} {
    %c0 = arith.constant 0 : index
    %c0_0 = arith.constant 0 : index
    %c0_1 = arith.constant 0 : index
    %0 = vector.load %arg1[%c0, %c0_0, %c0_1] : memref<2x8x32xf32, #tpu.memory_space<vmem>>, vector<2x8x32xf32>
    %c0_2 = arith.constant 0 : index
    %c0_3 = arith.constant 0 : index
    %1 = vector.load %arg2[%c0_2, %c0_3] : memref<2x8xf32, #tpu.memory_space<vmem>>, vector<2x8xf32>
    %c0_4 = arith.constant 0 : index
    %c0_5 = arith.constant 0 : index
    %2 = vector.load %arg3[%c0_4, %c0_5] : memref<1x32xf32, #tpu.memory_space<vmem>>, vector<1x32xf32>
    %cst = arith.constant 0.000000e+00 : f32
    %3 = vector.broadcast %cst : f32 to vector<2x8xf32>
    %4 = arith.cmpf ogt, %1, %3 : vector<2x8xf32>
    %5 = vector.shape_cast %2 : vector<1x32xf32> to vector<32xf32>
    %6 = vector.shape_cast %5 : vector<32xf32> to vector<1x1x32xf32>
    %7 = vector.broadcast %6 : vector<1x1x32xf32> to vector<2x8x32xf32>
    %8 = arith.mulf %0, %7 : vector<2x8x32xf32>
    %cst_6 = arith.constant dense<0.000000e+00> : vector<2x8xf32>
    %9 = vector.multi_reduction <add>, %8, %cst_6 [2] : vector<2x8x32xf32> to vector<2x8xf32>
    %cst_7 = arith.constant -1.000000e+32 : f32
    %10 = vector.broadcast %cst_7 : f32 to vector<2x8xf32>
    %11 = arith.select %4, %9, %10 : vector<2x8xi1>, vector<2x8xf32>
    %cst_8 = arith.constant dense<0xFF800000> : vector<2xf32>
    %12 = vector.multi_reduction <maximumf>, %11, %cst_8 [1] : vector<2x8xf32> to vector<2xf32>
    %13 = vector.shape_cast %12 : vector<2xf32> to vector<2x1xf32>
    %14 = vector.broadcast %13 : vector<2x1xf32> to vector<2x8xf32>
    %15 = arith.subf %11, %14 : vector<2x8xf32>
    %16 = math.exp %15 : vector<2x8xf32>
    %cst_9 = arith.constant dense<0.000000e+00> : vector<2xf32>
    %17 = vector.multi_reduction <add>, %16, %cst_9 [1] : vector<2x8xf32> to vector<2xf32>
    %18 = vector.shape_cast %17 : vector<2xf32> to vector<2x1xf32>
    %19 = tpu.reciprocal %18 : vector<2x1xf32> -> vector<2x1xf32>
    %20 = vector.broadcast %19 : vector<2x1xf32> to vector<2x8xf32>
    %21 = arith.mulf %16, %20 : vector<2x8xf32>
    %cst_10 = arith.constant 0.000000e+00 : f32
    %22 = vector.broadcast %cst_10 : f32 to vector<2x8xf32>
    %23 = arith.select %4, %21, %22 : vector<2x8xi1>, vector<2x8xf32>
    %24 = vector.shape_cast %23 : vector<2x8xf32> to vector<2x8x1xf32>
    %25 = vector.broadcast %24 : vector<2x8x1xf32> to vector<2x8x32xf32>
    %26 = arith.mulf %25, %0 : vector<2x8x32xf32>
    %cst_11 = arith.constant dense<0.000000e+00> : vector<2x32xf32>
    %27 = vector.multi_reduction <add>, %26, %cst_11 [1] : vector<2x8x32xf32> to vector<2x32xf32>
    %c0_12 = arith.constant 0 : index
    %c0_13 = arith.constant 0 : index
    %28 = vector.load %arg4[%c0_12, %c0_13] : memref<2x32xf32, #tpu.memory_space<vmem>>, vector<2x32xf32>
    tpu.vector_store %arg4[%c0_12, %c0_13], %27 {strides = array<i32>} : memref<2x32xf32, #tpu.memory_space<vmem>>, vector<2x32xf32>,
    %c0_14 = arith.constant 0 : index
    %c0_15 = arith.constant 0 : index
    %29 = vector.load %arg5[%c0_14, %c0_15] : memref<2x8xf32, #tpu.memory_space<vmem>>, vector<2x8xf32>
    tpu.vector_store %arg5[%c0_14, %c0_15], %21 {strides = array<i32>} : memref<2x8xf32, #tpu.memory_space<vmem>>, vector<2x8xf32>,
    return
  }
  func.func @transform_0(%arg0: i32) -> (i32, i32, i32) {
    %c0_i32 = arith.constant 0 : i32
    %c0_i32_0 = arith.constant 0 : i32
    %c0_i32_1 = arith.constant 0 : i32
    return %arg0, %c0_i32, %c0_i32_0 : i32, i32, i32
  }
  func.func @transform_1(%arg0: i32) -> (i32, i32) {
    %c0_i32 = arith.constant 0 : i32
    %c0_i32_0 = arith.constant 0 : i32
    return %arg0, %c0_i32 : i32, i32
  }
  func.func @transform_2(%arg0: i32) -> (i32, i32) {
    %c0_i32 = arith.constant 0 : i32
    %c0_i32_0 = arith.constant 0 : i32
    %c0_i32_1 = arith.constant 0 : i32
    return %c0_i32, %c0_i32_0 : i32, i32
  }
  func.func @transform_3(%arg0: i32) -> (i32, i32) {
    %c0_i32 = arith.constant 0 : i32
    %c0_i32_0 = arith.constant 0 : i32
    return %arg0, %c0_i32 : i32, i32
  }
  func.func @transform_4(%arg0: i32) -> (i32, i32) {
    %c0_i32 = arith.constant 0 : i32
    %c0_i32_0 = arith.constant 0 : i32
    return %arg0, %c0_i32 : i32, i32
  }
}

</mosaic_0001>

<llo_original>
// kernel: tpu_custom_call.1
$region0: #{tpu_custom_call.1}
  #allocation0 [shape = 'u32[]', space=smem, size = 0x4, offset = 0x4, fixed_abs, tag = 'smem constant byte address 0x4 - core index']
  #allocation1 [shape = 'u32[144,128]{1,0:T(1,128)}', space=vmem, size = 0x12000, scoped, tag = 'internal scratch']
  %s0 = inlined_call_operand.hbm [shape: f32[2,8,32], index: 0, kind: input, shape index: {}]
  %s1 = inlined_call_operand.vmem [shape: f32[2,8], index: 1, kind: input, shape index: {}]
  %s2 = inlined_call_operand.vmem [shape: f32[1,32], index: 2, kind: input, shape index: {}]
  %s3 = inlined_call_operand.hbm [shape: f32[2,32], index: 3, kind: output, shape index: {0}]
  %s4 = inlined_call_operand.hbm [shape: f32[2,8], index: 4, kind: output, shape index: {1}]
  %5 = xla_tuple %s3, %s4
  %s6 = sld [smem:[#allocation0]]
  $region34: #{tpu_custom_call.1} parent=0
    _
  %s8 = ssub.s32 1, %s6
  %s9 = scalar_select 0, %s8, %s6
  $region1: #{tpu_custom_call.1} parent=0
    #allocation2 [shape = 'u8[8192]{0}', space=vmem, size = 0x2000, scoped, tag = 'input window, operand 0, single buffered']
    #allocation3 [shape = 's32[1]{0}', space=sflag, size = 0x4, scoped, tag = 'scoped memory for tpu_custom_call.1']
    #allocation4 [shape = 's32[1]{0}', space=sflag, size = 0x4, scoped, tag = 'scoped memory for tpu_custom_call.1']
    #allocation5 [shape = 'u8[1024]{0}', space=vmem, size = 0x400, scoped, tag = 'output window, operand 0, single buffered']
    #allocation6 [shape = 'u8[1024]{0}', space=vmem, size = 0x400, scoped, tag = 'output window, operand 1, single buffered']
    #allocation7 [shape = 's32[1]{0}', space=sflag, size = 0x4, scoped, tag = 'scoped memory for tpu_custom_call.1']
    %10 = vsyncpa [#allocation3], 0
    %11 = vsyncpa [#allocation4], 0
    %12 = vsyncpa [#allocation7], 0
    // Predicated region
    $region2: #{tpu_custom_call.1} parent=1 // pred_check
      _
    $region3: #{tpu_custom_call.1} parent=1 // pred_check_branch
      %14 = sbr.rel (0) target = $region5
    $region4: #{tpu_custom_call.1} parent=1 // pred_region
      %s16 = ssub.s32 256, 256
      %17 = vsyncadd [#allocation3], %s16
      %s18 = sshll.u32 [#allocation2], 4
      %s19 = int_to_ptr.vmem [resolvable:$true] %s18
      %24 = dma.hbm_to_vmem [thread:$0]  %s0, 256, %s19, [#allocation3], 128, 128, 8
    $region5: #{tpu_custom_call.1} parent=1 // pred_fallthru
      _
    // Predicated region
    $region6: #{tpu_custom_call.1} parent=1 // pred_check
      _
    $region7: #{tpu_custom_call.1} parent=1 // pred_check_branch
      %26 = sbr.rel (0) target = $region9
    $region8: #{tpu_custom_call.1} parent=1 // pred_region
      _
    $region9: #{tpu_custom_call.1} parent=1 // pred_fallthru
      _
    // Predicated region
    $region10: #{tpu_custom_call.1} parent=1 // pred_check
      _
    $region11: #{tpu_custom_call.1} parent=1 // pred_check_branch
      %28 = sbr.rel (0) target = $region13
    $region12: #{tpu_custom_call.1} parent=1 // pred_region
      _
    $region13: #{tpu_custom_call.1} parent=1 // pred_fallthru
      _
    // Predicated region
    $region14: #{tpu_custom_call.1} parent=1 // pred_check
      _
    $region15: #{tpu_custom_call.1} parent=1 // pred_check_branch
      %30 = sbr.rel (0) target = $region17
    $region16: #{tpu_custom_call.1} parent=1 // pred_region
      %31 = dma.done [#allocation3], 256
    $region17: #{tpu_custom_call.1} parent=1 // pred_fallthru
      _
    %v32 = vld [vmem:[#allocation2] sm:$0xff]
    %v33 = vld [vmem:[#allocation2 + $0x8] sm:$0xff]
    %v34 = vld [vmem:[%s1] sm:$0x3]
    %v35 = vld [vmem:[%s2] sm:$0x1]
    %vm36 = vcmp.gt.f32.partialorder %v34, 0.0
    %v38 = vlaneseq
    %v39 = vshrl.u32 %v38, 7
    %v40 = vsub.s32 0, %v39
    %v41 = vrot.slane %v35, %v40
    %v43 = vmul.f32 %v32, %v41
    %v44 = vmul.f32 %v33, %v41
    %vm45 = vcmask 261120
    %v46 = vsel %vm45, %v43, 0.0
    %47 = vadd.xlane.f32.xlu0 %v46
    %v48 = vpop.xlane.xlu0 %47
    %v49 = vsel %vm45, %v44, 0.0
    %50 = vadd.xlane.f32.xlu0 %v49
    %v51 = vpop.xlane.xlu0 %50
    %v54 = vlaneseq
    %v55 = vand.u32 %v54, 127
    %v56 = vlaneseq
    %v57 = vshrl.u32 %v56, 7
    %v58 = vsub.s32 %v55, %v57
    %v59 = vrot.slane %v48, %v58
    %v60 = vlaneseq
    %v61 = vshrl.u32 %v60, 7
    %v62 = vsub.s32 %v55, %v61
    %v63 = vrot.slane %v51, %v62
    %vm64 = vcmask 1041409
    %v65 = vsel %vm64, %v63, %v59
    %v67 = vsel %vm36, %v65, -1e+32
    %vm68 = vcmask 58368
    %v69 = vsel %vm68, %v67, -inf
    %70 = vmax.xlane.f32.xlu0 %v69
    %v71 = vpop.xlane.xlu0 %70
    %v72 = vsub.f32 %v67, %v71
    %v73 = vmul.f32 %v72, 1.442695
    %v74 = vpow.pop %v73
    %v75 = vsel %vm68, %v74, 0.0
    %76 = vadd.xlane.f32.xlu0 %v75
    %v77 = vpop.xlane.xlu0 %76
    %v78 = vrcp.pop %v77
    %v79 = vmul.f32 %v74, %v78
    %v80 = vsel %vm36, %v79, 0.0
    %v81 = vlaneseq
    %v82 = vshrl.u32 %v81, 7
    %v83 = vsub.s32 0, %v82
    %v84 = vrot.slane %v80, %v83
    %86 = vbcast.lane.b32.xlu0 %v84, 256
    %v87 = vpop.permute.xlu0 %86
    %v88 = vlaneseq
    %v89 = vshrl.u32 %v88, 7
    %v90 = vsub.s32 1, %v89
    %v91 = vrot.slane %v80, %v90
    %93 = vbcast.lane.b32.xlu0 %v91, 256
    %v94 = vpop.permute.xlu0 %93
    %v95 = vmul.f32 %v87, %v32
    %v96 = vmul.f32 %v94, %v33
    %v97 = vsel %vm45, %v95, 0.0
    %v98 = vrot.slane %v97, 4
    %v99 = vadd.f32 %v97, %v98
    %v100 = vrot.slane %v99, 2
    %v101 = vadd.f32 %v99, %v100
    %v102 = vrot.slane %v101, 1
    %v103 = vadd.f32 %v101, %v102
    %v104 = vsel %vm45, %v96, 0.0
    %v105 = vrot.slane %v104, 4
    %v106 = vadd.f32 %v104, %v105
    %v107 = vrot.slane %v106, 2
    %v108 = vadd.f32 %v106, %v107
    %v109 = vrot.slane %v108, 1
    %v110 = vadd.f32 %v108, %v109
    %v113 = vsel %vm64, %v110, %v103
    %vm115 = vcmask 254976
    %116 = vst.msk [vmem:[#allocation5] sm:$0x3] %vm115, %v113
    %117 = vst.msk [vmem:[#allocation6] sm:$0x3] %vm68, %v79
    // Predicated region
    $region18: #{tpu_custom_call.1} parent=1 // pred_check
      _
    $region19: #{tpu_custom_call.1} parent=1 // pred_check_branch
      %119 = sbr.rel (0) target = $region21
    $region20: #{tpu_custom_call.1} parent=1 // pred_region
      %s121 = ssub.s32 32, 32
      %122 = vsyncadd [#allocation4], %s121
      %s124 = sshll.u32 [#allocation5], 4
      %s125 = int_to_ptr.vmem [resolvable:$true] %s124
      %127 = dma.vmem_to_hbm [thread:$0]  %s125, 32, %s3, [#allocation4]
    $region21: #{tpu_custom_call.1} parent=1 // pred_fallthru
      _
    // Predicated region
    $region22: #{tpu_custom_call.1} parent=1 // pred_check
      _
    $region23: #{tpu_custom_call.1} parent=1 // pred_check_branch
      %129 = sbr.rel (0) target = $region25
    $region24: #{tpu_custom_call.1} parent=1 // pred_region
      %s131 = ssub.s32 32, 32
      %132 = vsyncadd [#allocation7], %s131
      %s134 = sshll.u32 [#allocation6], 4
      %s135 = int_to_ptr.vmem [resolvable:$true] %s134
      %137 = dma.vmem_to_hbm [thread:$0]  %s135, 32, %s4, [#allocation7]
    $region25: #{tpu_custom_call.1} parent=1 // pred_fallthru
      _
    // Predicated region
    $region26: #{tpu_custom_call.1} parent=1 // pred_check
      _
    $region27: #{tpu_custom_call.1} parent=1 // pred_check_branch
      %139 = sbr.rel (0) target = $region29
    $region28: #{tpu_custom_call.1} parent=1 // pred_region
      %140 = dma.done [#allocation4], 32
    $region29: #{tpu_custom_call.1} parent=1 // pred_fallthru
      _
    // Predicated region
    $region30: #{tpu_custom_call.1} parent=1 // pred_check
      _
    $region31: #{tpu_custom_call.1} parent=1 // pred_check_branch
      %142 = sbr.rel (0) target = $region33
    $region32: #{tpu_custom_call.1} parent=1 // pred_region
      %143 = dma.done [#allocation7], 32
    $region33: #{tpu_custom_call.1} parent=1 // pred_fallthru
      _
    %144 = vsyncpa [#allocation3], 1
    %145 = vsyncpa [#allocation4], 1
    %146 = vsyncpa [#allocation7], 1

</llo_original>
